<compile_context>
chip_gen: v6e
topology: v6e:2x2x1
jax: 0.10.0
libtpu: 0.0.40
codegen_flags: <defaults>
</compile_context>

<pallas_src>
import jax
import jax.numpy as jnp
from jax.experimental import pallas as pl
from jax.experimental.pallas import tpu as pltpu


def _discriminator_kernel(x_ref, w_ref, b_ref, o_ref):
    # x_ref: (tb, D) VMEM, w_ref: (D, 1) VMEM, b_ref: (1, 1) SMEM scalar.
    h = jnp.dot(x_ref[...], w_ref[...], preferred_element_type=jnp.float32)  # (tb, 1)
    h = h + b_ref[0, 0]
    # LeakyReLU(0.2) then Sigmoid (matches the PyTorch forward order exactly).
    h = jnp.where(h >= 0, h, 0.2 * h)
    o_ref[...] = jax.nn.sigmoid(h).astype(o_ref.dtype)


def fold_params(params):
    """Fold the three bias-affine layers into one projection. Call ONCE at
    parameter-load time (hoisted out of the per-call path)."""
    w1, b1 = params["w1"], params["b1"]   # (D, 3), (1, 3)
    w2, b2 = params["w2"], params["b2"]   # (3, 5), (1, 5)
    w3, b3 = params["w3"], params["b3"]   # (5, 1), (1, 1)
    w_eff = (w1 @ w2) @ w3                               # (D, 1)
    b_eff = (b1 @ w2) @ w3 + b2 @ w3 + b3                # (1, 1)
    return w_eff, b_eff.reshape(1, 1).astype(jnp.float32)


def discriminator_forward(x, w_eff, b_eff, *, tile_b=4096):
    """x: [B, D] float32 or bfloat16. w_eff: (D, 1), b_eff: (1, 1) f32."""
    B, D = x.shape
    itemsize = jnp.dtype(x.dtype).itemsize

    # ---- per-generation VMEM / tile sizing --------------------------------
    try:
        vmem_capacity = int(pltpu.get_tpu_info().vmem_capacity_bytes)
    except Exception:  # conservative fallback (v7x-sized VMEM)
        vmem_capacity = 64 << 20
    # Budget for the DOUBLE-BUFFERED x tile: ~32 MiB on v7x (64 MiB VMEM),
    # ~48 MiB on v5e/v6e (128 MiB VMEM).
    x_budget = min(vmem_capacity // 2, 48 << 20)
    vmem_limit = min(x_budget + (8 << 20), vmem_capacity - (8 << 20))

    bytes_per_row_db = 2 * D * itemsize                  # 2 pipeline buffers
    cap = max(8, (x_budget // bytes_per_row_db) // 8 * 8)

    tb = min(int(tile_b), cap)
    # Guarantee >= 2 grid steps when B permits so v7x's two TensorCores both
    # get a share of the (parallel) batch axis.
    half_rows = -(-B // 2)
    tb = min(tb, max(8, ((half_rows + 7) // 8) * 8))
    tb = max(8, (tb // 8) * 8)                           # sublane multiple

    nt = pl.cdiv(B, tb)                                  # ragged last block OK

    w_eff = w_eff.astype(x.dtype)                        # tiny (D, 1) cast

    out = pl.pallas_call(
        _discriminator_kernel,
        out_shape=jax.ShapeDtypeStruct((B, 1), jnp.float32),
        grid_spec=pl.GridSpec(
            grid=(nt,),
            in_specs=[
                pl.BlockSpec((tb, D), lambda i: (i, 0)),            # x streamed
                pl.BlockSpec((D, 1), lambda i: (0, 0)),             # w_eff invariant
                pl.BlockSpec(memory_space=pltpu.MemorySpace.SMEM),  # b_eff scalar
            ],
            out_specs=pl.BlockSpec((tb, 1), lambda i: (i, 0)),
        ),
        compiler_params=pltpu.CompilerParams(
            dimension_semantics=("parallel",),
            vmem_limit_bytes=int(vmem_limit),
        ),
    )(x, w_eff, b_eff)
    return out


def init_params(key, input_size):
    """PyTorch Linear default init: U(-1/sqrt(fan_in), 1/sqrt(fan_in))."""
    ks = jax.random.split(key, 6)

    def linear(kw, kb, fan_in, fan_out):
        bound = 1.0 / jnp.sqrt(fan_in)
        w = jax.random.uniform(kw, (fan_in, fan_out), jnp.float32, -bound, bound)
        b = jax.random.uniform(kb, (1, fan_out), jnp.float32, -bound, bound)
        return w, b

    w1, b1 = linear(ks[0], ks[1], input_size, 3)
    w2, b2 = linear(ks[2], ks[3], 3, 5)
    w3, b3 = linear(ks[4], ks[5], 5, 1)
    return {"w1": w1, "b1": b1, "w2": w2, "b2": b2, "w3": w3, "b3": b3}


def reference_forward(x, p):
    # Pure-JAX reference: the original (uncollapsed) 3-linear chain.
    h = x @ p["w1"] + p["b1"]
    h = h @ p["w2"] + p["b2"]
    h = h @ p["w3"] + p["b3"]
    h = jnp.where(h >= 0, h, 0.2 * h)
    return 1.0 / (1.0 + jnp.exp(-h))


if __name__ == "__main__":
    key = jax.random.PRNGKey(0)
    k_params, k_x = jax.random.split(key)

    batch = 19        # deliberately NOT a multiple of the tile -> ragged last block
    input_size = 32   # small stand-in for the default 1000

    params = init_params(k_params, input_size)
    x = jax.random.normal(k_x, (batch, input_size), jnp.float32)

    # Fold once (parameter-load time), then run the kernel.
    w_eff, b_eff = fold_params(params)
    out = discriminator_forward(x, w_eff, b_eff)
    out = jax.block_until_ready(out)

    ref = reference_forward(x, params)
    assert out.shape == (batch, 1)
    assert jnp.allclose(out, ref, atol=1e-5, rtol=1e-5), "mismatch vs reference"

    print("KERNEL_OK")
</pallas_src>

<mosaic_0001>
module attributes {stable_mosaic.version = 11 : i64} {
  func.func @_discriminator_kernel(%arg0: i32, %arg1: memref<16x32xf32, #tpu.memory_space<vmem>>, %arg2: memref<32x1xf32, #tpu.memory_space<vmem>>, %arg3: memref<1x1xf32, #tpu.memory_space<smem>>, %arg4: memref<16x1xf32, #tpu.memory_space<vmem>>) attributes {dimension_semantics = [#tpu.dimension_semantics<parallel>], iteration_bounds = array<i64: 2>, scalar_prefetch = 0 : i64, scratch_operands = 0 : i64, tpu.core_type = #tpu.core_type<tc>, window_params = [{transform_indices = @transform_0, window_bounds = array<i64: 16, 32>}, {pipeline_mode = #tpu.pipeline_mode<synchronous>, transform_indices = @transform_1, window_bounds = array<i64: 32, 1>}, {transform_indices = @transform_2, window_bounds = array<i64: 1, 1>}, {transform_indices = @transform_3, window_bounds = array<i64: 16, 1>}]} {
    %c0 = arith.constant 0 : index
    %c0_0 = arith.constant 0 : index
    %0 = vector.load %arg1[%c0, %c0_0] : memref<16x32xf32, #tpu.memory_space<vmem>>, vector<16x32xf32>
    %c0_1 = arith.constant 0 : index
    %c0_2 = arith.constant 0 : index
    %1 = vector.load %arg2[%c0_1, %c0_2] : memref<32x1xf32, #tpu.memory_space<vmem>>, vector<32x1xf32>
    %cst = arith.constant dense<0.000000e+00> : vector<16x1xf32>
    %2 = tpu.matmul %0, %1, %cst {dimension_numbers = #tpu.dot_dimension_numbers<[1], [0], [0], [1], [0, 0, 1, 1], [], []>} : vector<16x32xf32>, vector<32x1xf32>, vector<16x1xf32> -> vector<16x1xf32>
    %c0_3 = arith.constant 0 : index
    %c0_4 = arith.constant 0 : index
    %3 = memref.load %arg3[%c0_3, %c0_4] : memref<1x1xf32, #tpu.memory_space<smem>>
    %4 = vector.broadcast %3 : f32 to vector<16x1xf32>
    %5 = arith.addf %2, %4 : vector<16x1xf32>
    %cst_5 = arith.constant 0.000000e+00 : f32
    %6 = vector.broadcast %cst_5 : f32 to vector<16x1xf32>
    %7 = arith.cmpf oge, %5, %6 : vector<16x1xf32>
    %cst_6 = arith.constant 2.000000e-01 : f32
    %8 = vector.broadcast %cst_6 : f32 to vector<16x1xf32>
    %9 = arith.mulf %8, %5 : vector<16x1xf32>
    %10 = arith.select %7, %5, %9 : vector<16x1xi1>, vector<16x1xf32>
    %11 = arith.negf %10 : vector<16x1xf32>
    %12 = math.exp %11 : vector<16x1xf32>
    %cst_7 = arith.constant 1.000000e+00 : f32
    %13 = vector.broadcast %cst_7 : f32 to vector<16x1xf32>
    %14 = arith.addf %13, %12 : vector<16x1xf32>
    %15 = arith.divf %13, %14 : vector<16x1xf32>
    %c0_8 = arith.constant 0 : index
    %c0_9 = arith.constant 0 : index
    %16 = vector.load %arg4[%c0_8, %c0_9] : memref<16x1xf32, #tpu.memory_space<vmem>>, vector<16x1xf32>
    tpu.vector_store %arg4[%c0_8, %c0_9], %15 {strides = array<i32>} : memref<16x1xf32, #tpu.memory_space<vmem>>, vector<16x1xf32>,
    return
  }
  func.func @transform_0(%arg0: i32) -> (i32, i32) {
    %c0_i32 = arith.constant 0 : i32
    %c0_i32_0 = arith.constant 0 : i32
    return %arg0, %c0_i32 : i32, i32
  }
  func.func @transform_1(%arg0: i32) -> (i32, i32) {
    %c0_i32 = arith.constant 0 : i32
    %c0_i32_0 = arith.constant 0 : i32
    %c0_i32_1 = arith.constant 0 : i32
    return %c0_i32, %c0_i32_0 : i32, i32
  }
  func.func @transform_2(%arg0: i32) -> (i32, i32) {
    %c0_i32 = arith.constant 0 : i32
    %c0_i32_0 = arith.constant 0 : i32
    %c0_i32_1 = arith.constant 0 : i32
    return %c0_i32, %c0_i32_0 : i32, i32
  }
  func.func @transform_3(%arg0: i32) -> (i32, i32) {
    %c0_i32 = arith.constant 0 : i32
    %c0_i32_0 = arith.constant 0 : i32
    return %arg0, %c0_i32 : i32, i32
  }
}

</mosaic_0001>

<llo_original>
// kernel: tpu_custom_call.1
$region0: #{tpu_custom_call.1}
  #allocation0 [shape = 'u32[]', space=smem, size = 0x4, offset = 0x4, fixed_abs, tag = 'smem constant byte address 0x4 - core index']
  #allocation1 [shape = 'u32[144,128]{1,0:T(1,128)}', space=vmem, size = 0x12000, scoped, tag = 'internal scratch']
  #allocation2 [shape = 'f32[1,1]{1,0:T(1,128)S(6)}', space=smem, size = 0x200, scoped, tag = 'scoped memory for tpu_custom_call.1']
  %s0 = inlined_call_operand.vmem [shape: f32[19,32], index: 0, kind: input, shape index: {}]
  %s1 = inlined_call_operand.vmem [shape: f32[32,1], index: 1, kind: input, shape index: {}]
  %s2 = inlined_call_operand.<no memory space> [shape: f32[1,1], index: 2, kind: input, shape index: {}]
  %s3 = inlined_call_operand.vmem [shape: f32[19,1], index: 3, kind: output, shape index: {}]
  %s4 = sld [smem:[#allocation0]]
  $region93: #{tpu_custom_call.1} parent=0
    _
  %s6 = ssub.s32 1, %s4
  %s7 = scalar_select 0, %s6, %s4
  %8 = sst [smem:[#allocation2]] %s2
  $region1: #{tpu_custom_call.1} parent=0
    #allocation3 [shape = 'u8[16384]{0}', space=vmem, size = 0x4000, scoped, tag = 'output window, operand 0']
    loop: start=0, step=1, limit=4
    $region2: #{tpu_custom_call.1} parent=1 // loop_pre_header
      _
    $region3: #{tpu_custom_call.1} parent=1 // loop_header
      %s10 = sphi 0, %s14
      %p11 = scmp.ge.s32.totalorder %s10, 4
      %s20 = sphi 0, %s22
      %s23 = sphi 0, %s20
      %s24 = sphi 0, %s23
      %s40 = sphi 0, %s24
      %s44 = sphi 0, %s44
      %s46 = sphi 0, %s44
      %s47 = sphi 0, %s46
      %s61 = sphi 0, %s47
      %s65 = sphi 0, %s65
      %s67 = sphi 0, %s65
      %s68 = sphi 0, %s67
      %s82 = sphi 0, %s68
      %s88 = sphi 0, %s90
      %s91 = sphi 0, %s88
      %s92 = sphi 0, %s91
      %s108 = sphi 0, %s92
    $region4: #{tpu_custom_call.1} parent=1 // loop_header_branch
      %13 = sbr.rel (%p11) target = $region8
    $region5: #{tpu_custom_call.1} parent=1 // loop_body
      %s15 = ssub.s32 %s10, 1
      %s16 = ssub.s32 %s10, 2
      %s17 = sadd.s32 %s10, 1
      %s18 = ssub.s32 %s10, %s17
      %p19 = scmp.eq.s32.totalorder %s18, 0
      %s21 = sadd.s32 %s20, 1
      %s22 = scalar_select %p19, %s20, %s21
      %p25 = pneg %p19
      %p26 = scmp.eq.s32.totalorder %s10, 1
      %p27 = por %p25, %p26
      %p28 = scmp.ne.s32.totalorder %s20, %s23
      %p29 = scmp.eq.s32.totalorder %s10, 0
      %p30 = por %p28, %p29
      %p31 = scmp.ne.s32.totalorder %s20, %s23
      %p32 = scmp.eq.s32.totalorder %s15, 1
      %p33 = por %p31, %p32
      %p34 = scmp.ne.s32.totalorder %s23, %s24
      %p35 = scmp.eq.s32.totalorder %s15, 0
      %p36 = por %p34, %p35
      %p37 = scmp.ne.s32.totalorder %s23, %s24
      %p38 = scmp.eq.s32.totalorder %s16, 1
      %p39 = por %p37, %p38
      %p41 = scmp.ne.s32.totalorder %s24, %s40
      %p42 = scmp.eq.s32.totalorder %s16, 0
      %p43 = por %p41, %p42
      %s45 = sadd.s32 %s44, 1
      %p48 = scmp.eq.s32.totalorder %s10, 1
      %p49 = scmp.ne.s32.totalorder %s44, %s46
      %p50 = scmp.eq.s32.totalorder %s10, 0
      %p51 = por %p49, %p50
      %p52 = scmp.ne.s32.totalorder %s44, %s46
      %p53 = scmp.eq.s32.totalorder %s15, 1
      %p54 = por %p52, %p53
      %p55 = scmp.ne.s32.totalorder %s46, %s47
      %p56 = scmp.eq.s32.totalorder %s15, 0
      %p57 = por %p55, %p56
      %p58 = scmp.ne.s32.totalorder %s46, %s47
      %p59 = scmp.eq.s32.totalorder %s16, 1
      %p60 = por %p58, %p59
      %p62 = scmp.ne.s32.totalorder %s47, %s61
      %p63 = scmp.eq.s32.totalorder %s16, 0
      %p64 = por %p62, %p63
      %s66 = sadd.s32 %s65, 1
      %p69 = scmp.eq.s32.totalorder %s10, 1
      %p70 = scmp.ne.s32.totalorder %s65, %s67
      %p71 = scmp.eq.s32.totalorder %s10, 0
      %p72 = por %p70, %p71
      %p73 = scmp.ne.s32.totalorder %s65, %s67
      %p74 = scmp.eq.s32.totalorder %s15, 1
      %p75 = por %p73, %p74
      %p76 = scmp.ne.s32.totalorder %s67, %s68
      %p77 = scmp.eq.s32.totalorder %s15, 0
      %p78 = por %p76, %p77
      %p79 = scmp.ne.s32.totalorder %s67, %s68
      %p80 = scmp.eq.s32.totalorder %s16, 1
      %p81 = por %p79, %p80
      %p83 = scmp.ne.s32.totalorder %s68, %s82
      %p84 = scmp.eq.s32.totalorder %s16, 0
      %p85 = por %p83, %p84
      %s86 = ssub.s32 %s10, %s17
      %p87 = scmp.eq.s32.totalorder %s86, 0
      %s89 = sadd.s32 %s88, 1
      %s90 = scalar_select %p87, %s88, %s89
      %p93 = pneg %p87
      %p94 = scmp.eq.s32.totalorder %s10, 1
      %p95 = por %p93, %p94
      %p96 = scmp.ne.s32.totalorder %s88, %s91
      %p97 = scmp.eq.s32.totalorder %s10, 0
      %p98 = por %p96, %p97
      %p99 = scmp.ne.s32.totalorder %s88, %s91
      %p100 = scmp.eq.s32.totalorder %s15, 1
      %p101 = por %p99, %p100
      %p102 = scmp.ne.s32.totalorder %s91, %s92
      %p103 = scmp.eq.s32.totalorder %s15, 0
      %p104 = por %p102, %p103
      %p105 = scmp.ne.s32.totalorder %s91, %s92
      %p106 = scmp.eq.s32.totalorder %s16, 1
      %p107 = por %p105, %p106
      %p109 = scmp.ne.s32.totalorder %s92, %s108
      %p110 = scmp.eq.s32.totalorder %s16, 0
      %p111 = por %p109, %p110
      %p112 = scmp.le.s32.totalorder 1, %s10
      %p113 = scmp.lt.s32.totalorder %s10, 3
      %p114 = pnand %p112, %p113
      %p115 = pneg %p114
      // Predicated region
      $region9: #{tpu_custom_call.1} parent=5 // pred_check
        _
      $region10: #{tpu_custom_call.1} parent=5 // pred_check_branch
        %117 = sbr.rel (%p114) target = $region12
      $region11: #{tpu_custom_call.1} parent=5 // pred_region
        %s118 = ssub.s32 %s10, 1
        // Predicated region
        $region13: #{tpu_custom_call.1} parent=11 // pred_check
          %p119 = pneg %p57
        $region14: #{tpu_custom_call.1} parent=11 // pred_check_branch
          %121 = sbr.rel (%p119) target = $region16
        $region15: #{tpu_custom_call.1} parent=11 // pred_region
          _
        $region16: #{tpu_custom_call.1} parent=11 // pred_fallthru
          _
        // Predicated region
        $region17: #{tpu_custom_call.1} parent=11 // pred_check
          %p122 = pneg %p78
        $region18: #{tpu_custom_call.1} parent=11 // pred_check_branch
          %124 = sbr.rel (%p122) target = $region20
        $region19: #{tpu_custom_call.1} parent=11 // pred_region
          _
        $region20: #{tpu_custom_call.1} parent=11 // pred_fallthru
          _
      $region12: #{tpu_custom_call.1} parent=5 // pred_fallthru
        _
      %p125 = scmp.lt.s32.totalorder %s10, 2
      // Predicated region
      $region21: #{tpu_custom_call.1} parent=5 // pred_check
        %p126 = pneg %p125
      $region22: #{tpu_custom_call.1} parent=5 // pred_check_branch
        %128 = sbr.rel (%p126) target = $region24
      $region23: #{tpu_custom_call.1} parent=5 // pred_region
        // Predicated region
        $region25: #{tpu_custom_call.1} parent=23 // pred_check
          %p129 = pneg %p30
        $region26: #{tpu_custom_call.1} parent=23 // pred_check_branch
          %131 = sbr.rel (%p129) target = $region28
        $region27: #{tpu_custom_call.1} parent=23 // pred_region
          %s132 = smul.u32 2, %s10
          %s133 = ssub.s32 3, %s132
          %p134 = scmp.lt.s32.totalorder %s133, 2
          %s135 = scalar_select %p134, %s133, 2
          %s136 = smul.u32 128, %s135
          %p137 = scmp.lt.s32.totalorder %s132, 2
          %s138 = scalar_select %p137, %s132, 2
          %s139 = smul.addr %s138, 8
          %s140 = scalar_lea.vmem %s0, %s139
          %s141 = smul.u32 2, %s10
          %s142 = ssub.s32 3, %s141
          %p143 = scmp.lt.s32.totalorder %s142, 2
          %s144 = scalar_select %p143, %s142, 2
          %s145 = smul.u32 128, %s144
        $region28: #{tpu_custom_call.1} parent=23 // pred_fallthru
          _
      $region24: #{tpu_custom_call.1} parent=5 // pred_fallthru
        _
      %p146 = scmp.le.s32.totalorder 1, %s10
      %p147 = scmp.lt.s32.totalorder %s10, 3
      %p148 = pnand %p146, %p147
      %p149 = pneg %p148
      // Predicated region
      $region29: #{tpu_custom_call.1} parent=5 // pred_check
        _
      $region30: #{tpu_custom_call.1} parent=5 // pred_check_branch
        %151 = sbr.rel (%p148) target = $region32
      $region31: #{tpu_custom_call.1} parent=5 // pred_region
        %s152 = ssub.s32 %s10, 1
        %s153 = smul.u32 2, %s15
        %s154 = ssub.s32 3, %s153
        %p155 = scmp.lt.s32.totalorder %s154, 2
        %s156 = scalar_select %p155, %s154, 2
        %s157 = smul.u32 128, %s156
        %p158 = scmp.lt.s32.totalorder %s153, 2
        %s159 = scalar_select %p158, %s153, 2
        %s160 = smul.addr %s159, 8
        %s161 = scalar_lea.vmem %s0, %s160
        %p162 = pneg %p36
        %p163 = pneg %p33
        %p164 = pneg %p57
        %p165 = pneg %p54
        %p166 = pneg %p78
        %p167 = pneg %p75
        %p168 = pneg %p104
        %p169 = pneg %p101
        %s170 = sand.u32 %s91, 1
        %s171 = sand.u32 %s91, 1
        %s172 = smul.addr %s171, 16
        %s173 = scalar_lea.vmem [#allocation3], %s172
        %s174 = smul.u32 2, %s15
        %s175 = ssub.s32 3, %s174
        %p176 = scmp.lt.s32.totalorder %s175, 2
        %s177 = scalar_select %p176, %s175, 2
        %s178 = smul.u32 128, %s177
        %p179 = scmp.lt.s32.totalorder %s174, 2
        %s180 = scalar_select %p179, %s174, 2
        %s181 = smul.addr %s180, 8
        %s182 = scalar_lea.vmem %s0, %s181
        %s183 = smul.u32 2, %s15
        %s184 = ssub.s32 3, %s183
        %p185 = scmp.lt.s32.totalorder %s184, 2
        %s186 = scalar_select %p185, %s184, 2
        %s187 = smul.u32 128, %s186
        %s188 = smul.u32 2, %s15
        %s189 = ssub.s32 3, %s188
        %p190 = scmp.lt.s32.totalorder %s189, 2
        %s191 = scalar_select %p190, %s189, 2
        %s192 = smul.u32 128, %s191
        %v193 = vld [vmem:[%s182] sm:$0xff]
        %v194 = vld [vmem:[%s182 + $0x8] sm:$0xff]
        %v195 = vld [vmem:[%s1] sm:$0xff]
        %v196 = vld [vmem:[%s1 + $0x8] sm:$0xff]
        %v197 = vld [vmem:[%s1 + $0x10] sm:$0xff]
        %v198 = vld [vmem:[%s1 + $0x18] sm:$0xff]
        %s199 = sld [smem:[#allocation2]]
        %v200 = vstv %s199
        %vm201 = vcmask 261120
        %v203 = vsel %vm201, %v193, 0
        %v206 = vsel %vm201, %v194, 0
        %208 = vmatprep.subr.mxu0 0.0
        %209 = vmatpush1.msra.mxu0 0.0
        %210 = vmatprep.subr.mxu0 0.0
        %211 = vmatpush1.msra.mxu0 0.0
        %212 = vmatprep.subr.mxu0 0.0
        %213 = vmatpush1.msra.mxu0 0.0
        %214 = vmatprep.subr.mxu0 0.0
        %215 = vmatpush1.msra.mxu0 0.0
        %216 = vmatprep.subr.mxu0 0.0
        %217 = vmatpush1.msra.mxu0 0.0
        %218 = vmatprep.subr.mxu0 0.0
        %219 = vmatpush1.msra.mxu0 0.0
        %220 = vmatprep.subr.mxu0 0.0
        %221 = vmatpush1.msra.mxu0 0.0
        %222 = vmatprep.subr.mxu0 0.0
        %223 = vmatpush1.msra.mxu0 0.0
        %224 = vmatprep.subr.mxu0 0.0
        %225 = vmatpush1.msra.mxu0 0.0
        %226 = vmatprep.subr.mxu0 0.0
        %227 = vmatpush1.msra.mxu0 0.0
        %228 = vmatprep.subr.mxu0 0.0
        %229 = vmatpush1.msra.mxu0 0.0
        %230 = vmatprep.subr.mxu0 0.0
        %231 = vmatpush1.msra.mxu0 0.0
        %232 = vmatprep.subr.mxu0 0.0
        %233 = vmatpush1.msra.mxu0 %v198
        %234 = vmatprep.subr.mxu0 0.0
        %235 = vmatpush1.msra.mxu0 %v197
        %236 = vmatprep.subr.mxu0 0.0
        %237 = vmatpush1.msra.mxu0 %v196
        %238 = vmatprep.subr.mxu0 0.0
        %239 = vmatpush1.msra.mxu0 %v195
        %240 = vmatprep.subr.mxu0 0.0
        %241 = vmatpush2.msra.mxu0 0.0
        %242 = vmatprep.subr.mxu0 0.0
        %243 = vmatpush2.msra.mxu0 0.0
        %244 = vmatprep.subr.mxu0 0.0
        %245 = vmatpush2.msra.mxu0 0.0
        %246 = vmatprep.subr.mxu0 0.0
        %247 = vmatpush2.msra.mxu0 0.0
        %248 = vmatprep.subr.mxu0 0.0
        %249 = vmatpush2.msra.mxu0 0.0
        %250 = vmatprep.subr.mxu0 0.0
        %251 = vmatpush2.msra.mxu0 0.0
        %252 = vmatprep.subr.mxu0 0.0
        %253 = vmatpush2.msra.mxu0 0.0
        %254 = vmatprep.subr.mxu0 0.0
        %255 = vmatpush2.msra.mxu0 0.0
        %256 = vmatprep.subr.mxu0 0.0
        %257 = vmatpush2.msra.mxu0 0.0
        %258 = vmatprep.subr.mxu0 0.0
        %259 = vmatpush2.msra.mxu0 0.0
        %260 = vmatprep.subr.mxu0 0.0
        %261 = vmatpush2.msra.mxu0 0.0
        %262 = vmatprep.subr.mxu0 0.0
        %263 = vmatpush2.msra.mxu0 0.0
        %264 = vmatprep.subr.mxu0 0.0
        %265 = vmatpush2.msra.mxu0 0.0
        %266 = vmatprep.subr.mxu0 0.0
        %267 = vmatpush2.msra.mxu0 0.0
        %268 = vmatprep.subr.mxu0 0.0
        %269 = vmatpush2.msra.mxu0 0.0
        %270 = vmatprep.subr.mxu0 0.0
        %271 = vmatpush2.msra.mxu0 0.0
        %272 = vmatprep.mubr.f32.mxu0 0.0
        %273 = vmatmul.mubr.f32.gmra.mxu0 %v203
        %v274 = vpop.f32.mrf.mxu0
        %v275 = vadd.f32 %v200, %v274
        %v276 = vpop.f32.mrf.mxu0
        %277 = vmatprep.mubr.f32.mxu0 0.0
        %278 = vmatmul.mubr.f32.gmra.mxu0 %v206
        %v279 = vpop.f32.mrf.mxu0
        %v280 = vadd.f32 %v200, %v279
        %v281 = vpop.f32.mrf.mxu0
        %282 = vdwg.mxu0
        %vm283 = vcmp.ge.f32.partialorder %v275, 0.0
        %vm284 = vcmp.ge.f32.partialorder %v280, 0.0
        %v285 = vmul.f32 %v275, 0.2
        %v286 = vmul.f32 %v280, 0.2
        %v287 = vsel %vm283, %v275, %v285
        %v288 = vsel %vm284, %v280, %v286
        %v289 = vxor.u32 %v287, 2147483648
        %v290 = vxor.u32 %v288, 2147483648
        %v291 = vmul.f32 %v289, 1.442695
        %v292 = vpow.pop %v291
        %v293 = vmul.f32 %v290, 1.442695
        %v294 = vpow.pop %v293
        %v295 = vadd.f32 %v292, 1.0
        %v296 = vadd.f32 %v294, 1.0
        %v297 = vrcp.pop %v295
        %v298 = vmul.f32 1.0, %v297
        %v299 = vrcp.pop %v296
        %v300 = vmul.f32 1.0, %v299
        %vm301 = vcmask 7168
        %302 = vst.msk [vmem:[%s173] sm:$0xff] %vm301, %v298
        %303 = vst.msk [vmem:[%s173 + $0x8] sm:$0xff] %vm301, %v300
        %s304 = sand.u32 %s91, 1
        %s305 = sand.u32 %s91, 1
        %s306 = smul.addr %s305, 16
        %s307 = scalar_lea.vmem [#allocation3], %s306
        // Predicated region
        $region33: #{tpu_custom_call.1} parent=31 // pred_check
          %p308 = pneg %p101
        $region34: #{tpu_custom_call.1} parent=31 // pred_check_branch
          %310 = sbr.rel (%p308) target = $region36
        $region35: #{tpu_custom_call.1} parent=31 // pred_region
          %s311 = smul.u32 2, %s15
          %s312 = ssub.s32 3, %s311
          %p313 = scmp.lt.s32.totalorder %s312, 2
          %s314 = scalar_select %p313, %s312, 2
          %s315 = smul.u32 128, %s314
          %p316 = scmp.ne.s32.totalorder 0, %s315
          %s317 = smul.addr %s311, 8
          %s318 = scalar_lea.vmem %s3, %s317
          // Predicated region
          $region37: #{tpu_custom_call.1} parent=35 // pred_check
            %p319 = pneg %p316
          $region38: #{tpu_custom_call.1} parent=35 // pred_check_branch
            %321 = sbr.rel (%p319) target = $region40
          $region39: #{tpu_custom_call.1} parent=35 // pred_region
            // Predicated region
            $region41: #{tpu_custom_call.1} parent=39 // pred_check
              _
            $region42: #{tpu_custom_call.1} parent=39 // pred_check_branch
              %323 = sbr.rel (0) target = $region44
            $region43: #{tpu_custom_call.1} parent=39 // pred_region
              // Predicated region
              $region63: #{tpu_custom_call.1} parent=43 // pred_check
                _
              $region64: #{tpu_custom_call.1} parent=43 // pred_check_branch
                %375 = sbr.rel (0) target = $region66
              $region65: #{tpu_custom_call.1} parent=43 // pred_region
                %s376 = sshrl.u32 %s314, 1
                // While loop
                $region67: #{tpu_custom_call.1} parent=65 // loop_pre_header
                  _
                $region68: #{tpu_custom_call.1} parent=65 // loop_header
                  %s378 = sphi 0, %s380
                  %p379 = scmp.ge.s32.totalorder %s378, %s376
                  %s383 = sphi 0, %s392
                  %s384 = sphi %s307, %s395
                  %s385 = sphi %s318, %s396
                $region69: #{tpu_custom_call.1} parent=65 // loop_header_branch
                  %382 = sbr.rel (%p379) target = $region73
                $region70: #{tpu_custom_call.1} parent=65 // loop_body
                  %v386 = vld [vmem:[%s384] sm:$0xff]
                  %387 = vst [vmem:[%s385] sm:$0xff] %v386
                  %v388 = vld [vmem:[%s384 + $0x8] sm:$0xff]
                  %389 = vst [vmem:[%s385 + $0x8] sm:$0xff] %v388
                  %s390 = sadd.s32 1, %s383
                  %p391 = scmp.ge.s32.totalorder %s390, %s376
                  %s392 = scalar_select %p391, 0, %s390
                  %s393 = smul.u32 %s392, 16
                  %s394 = smul.u32 %s392, 16
                  %s395 = scalar_lea.vmem %s307, %s393 [#allocation3]
                  %s396 = scalar_lea.vmem %s318, %s394
                $region71: #{tpu_custom_call.1} parent=65 // loop_footer
                  %s380 = sadd.s32 %s378, 1
                $region72: #{tpu_custom_call.1} parent=65 // loop_footer_branch
                  %377 = sbr.rel target = $region68
                $region73: #{tpu_custom_call.1} parent=65 // loop_exit
                  _
                %s397 = sshrl.u32 %s314, 1
                %s398 = sand.u32 %s314, 1
                %s399 = smul.u32 %s397, 2
                %s400 = smul.u32 8, %s399
                %s401 = scalar_lea.vmem %s307, %s400 [#allocation3]
                %s402 = smul.u32 8, %s399
                %s403 = scalar_lea.vmem %s318, %s402
                // While loop
                $region74: #{tpu_custom_call.1} parent=65 // loop_pre_header
                  _
                $region75: #{tpu_custom_call.1} parent=65 // loop_header
                  %s405 = sphi 0, %s407
                  %p406 = scmp.ge.s32.totalorder %s405, %s398
                  %s410 = sphi 0, %s417
                  %s411 = sphi %s401, %s420
                  %s412 = sphi %s403, %s421
                $region76: #{tpu_custom_call.1} parent=65 // loop_header_branch
                  %409 = sbr.rel (%p406) target = $region80
                $region77: #{tpu_custom_call.1} parent=65 // loop_body
                  %v413 = vld [vmem:[%s411] sm:$0xff]
                  %414 = vst [vmem:[%s412] sm:$0xff] %v413
                  %s415 = sadd.s32 1, %s410
                  %p416 = scmp.ge.s32.totalorder %s415, %s398
                  %s417 = scalar_select %p416, 0, %s415
                  %s418 = smul.u32 %s417, 8
                  %s419 = smul.u32 %s417, 8
                  %s420 = scalar_lea.vmem %s401, %s418 [#allocation3]
                  %s421 = scalar_lea.vmem %s403, %s419
                $region78: #{tpu_custom_call.1} parent=65 // loop_footer
                  %s407 = sadd.s32 %s405, 1
                $region79: #{tpu_custom_call.1} parent=65 // loop_footer_branch
                  %404 = sbr.rel target = $region75
                $region80: #{tpu_custom_call.1} parent=65 // loop_exit
                  _
              $region66: #{tpu_custom_call.1} parent=43 // pred_fallthru
                _
              // Predicated region
              $region81: #{tpu_custom_call.1} parent=43 // pred_check
                _
              $region82: #{tpu_custom_call.1} parent=43 // pred_check_branch
                %423 = sbr.rel target = $region84
              $region83: #{tpu_custom_call.1} parent=43 // pred_region
                _
              $region84: #{tpu_custom_call.1} parent=43 // pred_fallthru
                _
            $region44: #{tpu_custom_call.1} parent=39 // pred_fallthru
              _
            // Predicated region
            $region45: #{tpu_custom_call.1} parent=39 // pred_check
              _
            $region46: #{tpu_custom_call.1} parent=39 // pred_check_branch
              %325 = sbr.rel target = $region48
            $region47: #{tpu_custom_call.1} parent=39 // pred_region
              %s327 = ssub.s32 256, 1
              %s328 = sshrl.u32 %s314, 1
              // While loop
              $region49: #{tpu_custom_call.1} parent=47 // loop_pre_header
                _
              $region50: #{tpu_custom_call.1} parent=47 // loop_header
                %s330 = sphi 0, %s332
                %p331 = scmp.ge.s32.totalorder %s330, %s328
                %s335 = sphi 0, %s344
                %s336 = sphi %s307, %s347
                %s337 = sphi %s318, %s348
              $region51: #{tpu_custom_call.1} parent=47 // loop_header_branch
                %334 = sbr.rel (%p331) target = $region55
              $region52: #{tpu_custom_call.1} parent=47 // loop_body
                %v338 = vld [vmem:[%s336] sm:%s327]
                %339 = vst [vmem:[%s337] sm:%s327] %v338
                %v340 = vld [vmem:[%s336 + $0x8] sm:%s327]
                %341 = vst [vmem:[%s337 + $0x8] sm:%s327] %v340
                %s342 = sadd.s32 1, %s335
                %p343 = scmp.ge.s32.totalorder %s342, %s328
                %s344 = scalar_select %p343, 0, %s342
                %s345 = smul.u32 %s344, 16
                %s346 = smul.u32 %s344, 16
                %s347 = scalar_lea.vmem %s307, %s345 [#allocation3]
                %s348 = scalar_lea.vmem %s318, %s346
              $region53: #{tpu_custom_call.1} parent=47 // loop_footer
                %s332 = sadd.s32 %s330, 1
              $region54: #{tpu_custom_call.1} parent=47 // loop_footer_branch
                %329 = sbr.rel target = $region50
              $region55: #{tpu_custom_call.1} parent=47 // loop_exit
                _
              %s349 = sshrl.u32 %s314, 1
              %s350 = sand.u32 %s314, 1
              %s351 = smul.u32 %s349, 2
              %s352 = smul.u32 8, %s351
              %s353 = scalar_lea.vmem %s307, %s352 [#allocation3]
              %s354 = smul.u32 8, %s351
              %s355 = scalar_lea.vmem %s318, %s354
              // While loop
              $region56: #{tpu_custom_call.1} parent=47 // loop_pre_header
                _
              $region57: #{tpu_custom_call.1} parent=47 // loop_header
                %s357 = sphi 0, %s359
                %p358 = scmp.ge.s32.totalorder %s357, %s350
                %s362 = sphi 0, %s369
                %s363 = sphi %s353, %s372
                %s364 = sphi %s355, %s373
              $region58: #{tpu_custom_call.1} parent=47 // loop_header_branch
                %361 = sbr.rel (%p358) target = $region62
              $region59: #{tpu_custom_call.1} parent=47 // loop_body
                %v365 = vld [vmem:[%s363] sm:%s327]
                %366 = vst [vmem:[%s364] sm:%s327] %v365
                %s367 = sadd.s32 1, %s362
                %p368 = scmp.ge.s32.totalorder %s367, %s350
                %s369 = scalar_select %p368, 0, %s367
                %s370 = smul.u32 %s369, 8
                %s371 = smul.u32 %s369, 8
                %s372 = scalar_lea.vmem %s353, %s370 [#allocation3]
                %s373 = scalar_lea.vmem %s355, %s371
              $region60: #{tpu_custom_call.1} parent=47 // loop_footer
                %s359 = sadd.s32 %s357, 1
              $region61: #{tpu_custom_call.1} parent=47 // loop_footer_branch
                %356 = sbr.rel target = $region57
              $region62: #{tpu_custom_call.1} parent=47 // loop_exit
                _
            $region48: #{tpu_custom_call.1} parent=39 // pred_fallthru
              _
          $region40: #{tpu_custom_call.1} parent=35 // pred_fallthru
            _
          %424 = vnop
        $region36: #{tpu_custom_call.1} parent=31 // pred_fallthru
          _
      $region32: #{tpu_custom_call.1} parent=5 // pred_fallthru
        _
      %p425 = scmp.le.s32.totalorder 2, %s10
      // Predicated region
      $region85: #{tpu_custom_call.1} parent=5 // pred_check
        %p426 = pneg %p425
      $region86: #{tpu_custom_call.1} parent=5 // pred_check_branch
        %428 = sbr.rel (%p426) target = $region88
      $region87: #{tpu_custom_call.1} parent=5 // pred_region
        %s429 = ssub.s32 %s10, 2
        // Predicated region
        $region89: #{tpu_custom_call.1} parent=87 // pred_check
          %p430 = pneg %p107
        $region90: #{tpu_custom_call.1} parent=87 // pred_check_branch
          %432 = sbr.rel (%p430) target = $region92
        $region91: #{tpu_custom_call.1} parent=87 // pred_region
          %s433 = sand.u32 %s92, 1
          %s434 = sand.u32 %s92, 1
          %s435 = smul.addr %s434, 16
          %s436 = scalar_lea.vmem [#allocation3], %s435
        $region92: #{tpu_custom_call.1} parent=87 // pred_fallthru
          _
      $region88: #{tpu_custom_call.1} parent=5 // pred_fallthru
        _
    $region6: #{tpu_custom_call.1} parent=1 // loop_footer
      %s14 = sadd.s32 1, %s10
    $region7: #{tpu_custom_call.1} parent=1 // loop_footer_branch
      %9 = sbr.rel target = $region3
    $region8: #{tpu_custom_call.1} parent=1 // loop_exit
      _

</llo_original>
